<compile_context>
chip_gen: v6e
topology: v6e:2x2x1
jax: 0.10.0
libtpu: 0.0.40
codegen_flags: <defaults>
</compile_context>

<pallas_src>
import functools

import jax
import jax.numpy as jnp
import numpy as np
from jax.experimental import pallas as pl
from jax.experimental.pallas import tpu as pltpu


# ----------------------------------------------------------------------------
# Pallas kernel: fused harmonic sine-bank + gain
# ----------------------------------------------------------------------------
def _harmonic_kernel(scale_ref, f0_ref, harm_ref, out_ref, *,
                     sample_rate, hop, n_harmonics):
    # scale_ref, f0_ref: (1, F, 1)   harm_ref: (1, F, K)   out_ref: (1, F, hop)
    # F frames on the sublane axis, hop samples on the lane axis; frame-rate
    # controls are hold-upsampled here via lane broadcasts (no HBM blowup).
    _, F, H = out_ref.shape

    scale = scale_ref[...]            # (1, F, 1)  amp*gain folded at frame rate
    f0 = f0_ref[...]                  # (1, F, 1)
    harm = harm_ref[...]              # (1, F, K)

    # Global sample index t = (frame0 + f) * hop + s  (frame-tile offset from grid).
    frame0 = (pl.program_id(1) * F).astype(jnp.float32)
    f_idx = jax.lax.broadcasted_iota(jnp.int32, (1, F, H), 1).astype(jnp.float32)
    s_idx = jax.lax.broadcasted_iota(jnp.int32, (1, F, H), 2).astype(jnp.float32)
    t = (frame0 + f_idx) * float(hop) + s_idx

    # Fundamental phase in cycles, wrapped to [0, 1) before sin (f32 precision).
    # (For very long signals / high f0 a per-frame phase accumulator would
    #  further reduce wrap error; not needed at these sizes.)
    cycles = f0 * (t * (1.0 / sample_rate))
    cycles = cycles - jnp.floor(cycles)
    theta = (2.0 * jnp.pi) * cycles

    s1 = jnp.sin(theta)               # 1 EUP op
    c2 = 2.0 * jnp.cos(theta)         # 1 EUP op

    # Chebyshev recurrence: sin(k*th) = 2*cos(th)*sin((k-1)th) - sin((k-2)th)
    acc = harm[:, :, 0:1] * s1        # harmonic 1
    s_prev2 = jnp.zeros_like(s1)
    s_prev1 = s1
    for k in range(1, n_harmonics):   # static trip count, unrolled at trace time
        s_k = c2 * s_prev1 - s_prev2
        acc = acc + harm[:, :, k:k + 1] * s_k
        s_prev2, s_prev1 = s_prev1, s_k

    out_ref[...] = scale * acc


def harmonic_bank_pallas(scale, f0, harm, *, sample_rate, hop, frames_per_block):
    """scale, f0: [B, n_frames, 1]; harm: [B, n_frames, K] -> audio [B, n_frames*hop]."""
    B, n_frames, K = harm.shape
    F = min(frames_per_block, n_frames)
    assert n_frames % F == 0, "n_frames must be divisible by frames_per_block"
    grid = (B, n_frames // F)

    kernel = functools.partial(_harmonic_kernel, sample_rate=float(sample_rate),
                               hop=int(hop), n_harmonics=int(K))
    out = pl.pallas_call(
        kernel,
        out_shape=jax.ShapeDtypeStruct((B, n_frames, hop), jnp.float32),
        grid=grid,
        in_specs=[
            pl.BlockSpec((1, F, 1), lambda b, j: (b, j, 0)),   # scale = amp*gain
            pl.BlockSpec((1, F, 1), lambda b, j: (b, j, 0)),   # f0_hz
            pl.BlockSpec((1, F, K), lambda b, j: (b, j, 0)),   # harmonic distribution
        ],
        out_specs=pl.BlockSpec((1, F, hop), lambda b, j: (b, j, 0)),
        compiler_params=pltpu.CompilerParams(
            dimension_semantics=("parallel", "parallel"),
            vmem_limit_bytes=32 * 1024 * 1024),
    )(scale, f0, harm)
    # [B, n_frames, hop] is row-major == [B, n_samples]; the reshape is free.
    return out.reshape(B, n_frames * hop)


# ----------------------------------------------------------------------------
# Processors (mirror the PyTorch Processor / Gen hierarchy)
# ----------------------------------------------------------------------------
class Processor:
    def __init__(self, name):
        self.name = name

    def get_param_sizes(self):
        raise NotImplementedError

    def __call__(self, *args, **kwargs):
        raise NotImplementedError


class Gen(Processor):
    pass


class HarmonicGen(Gen):
    """Harmonic sine-bank generator with the per-frame gain fused in
    (perf review: single pallas_call, no separate gain kernel / HBM round trip)."""

    def __init__(self, name, n_harmonics, sample_rate, frames_per_block=8):
        super().__init__(name)
        self.n_harmonics = n_harmonics
        self.sample_rate = sample_rate
        self.frames_per_block = frames_per_block

    def get_param_sizes(self):
        return {'amplitudes': 1,
                'harmonic_distribution': self.n_harmonics,
                'gain': 1,
                'f0_hz': 1}

    def __call__(self, amplitudes, harmonic_distribution, gain, f0_hz, n_samples):
        B, n_frames, K = harmonic_distribution.shape
        assert n_samples % n_frames == 0, "n_samples must be a multiple of n_frames"
        hop = n_samples // n_frames
        # Fold amp*gain at frame rate (n_frames elements, negligible) so the
        # kernel applies one per-frame scale and the gain stage costs nothing.
        scale = (amplitudes * gain).astype(jnp.float32)
        return harmonic_bank_pallas(
            scale,
            f0_hz.astype(jnp.float32),
            harmonic_distribution.astype(jnp.float32),
            sample_rate=self.sample_rate, hop=hop,
            frames_per_block=self.frames_per_block)


# ----------------------------------------------------------------------------
# Synthesizer (exact port of the PyTorch module's logic)
# ----------------------------------------------------------------------------
class Synthesizer:
    def __init__(self, dag, name='synth', fixed_params={}):
        self.dag = dag
        self.name = name
        self.ext_param_sizes = {}
        self.processor_names = [processor.name for processor, connections in self.dag]
        self.fixed_param_names = list(fixed_params.keys())
        self.fixed_params = fixed_params
        for processor, connections in self.dag:
            ext_params = [k for k, v in connections.items()
                          if k not in self.processor_names + self.fixed_param_names]
            ext_details = {connections[k]: v
                           for k, v in processor.get_param_sizes().items()
                           if k in ext_params}
            self.ext_param_sizes.update(ext_details)
        self.ext_param_size = sum(self.ext_param_sizes.values())

    def fill_params(self, input_tensor, conditioning=None):
        curr_idx = 0
        dag_input = {}
        batch_size = input_tensor.shape[0]
        n_frames = input_tensor.shape[1]
        for ext_param, param_size in self.ext_param_sizes.items():
            dag_input[ext_param] = input_tensor[:, :, curr_idx:curr_idx + param_size]
            curr_idx += param_size
        for param_name, param_value in self.fixed_params.items():
            if param_value is None:
                value = conditioning[param_name]
            elif len(param_value.shape) == 1:
                value = jnp.broadcast_to(param_value[None, None, :],
                                         (batch_size, n_frames, param_value.shape[0]))
            elif len(param_value.shape) == 2:
                value = jnp.broadcast_to(param_value[None, :, :],
                                         (batch_size,) + param_value.shape)
            dag_input[param_name] = value
        return dag_input

    def forward(self, dag_inputs, n_samples=None):
        outputs = dag_inputs
        for node in self.dag:
            processor, connections = node
            inputs = {key: outputs[connections[key]] for key in connections}
            if n_samples and isinstance(processor, Gen):
                inputs.update({'n_samples': n_samples})
            signal = processor(**inputs)
            outputs[processor.name] = signal
        output_name = self.dag[-1][0].name
        outputs[self.name] = outputs[output_name]
        return (outputs[self.name], outputs)

    __call__ = forward


# ----------------------------------------------------------------------------
# Reference (float64 numpy, mirrors the DDSP math) for correctness check
# ----------------------------------------------------------------------------
def _reference(dag_input, n_samples, sample_rate, n_harmonics):
    amp = np.asarray(dag_input['AMP'], dtype=np.float64)
    harm = np.asarray(dag_input['HARM'], dtype=np.float64)
    gain = np.asarray(dag_input['GAIN'], dtype=np.float64)
    f0 = np.asarray(dag_input['f0_hz'], dtype=np.float64)
    n_frames = amp.shape[1]
    hop = n_samples // n_frames
    up = lambda x: np.repeat(x, hop, axis=1)          # hold-upsample to sample rate
    amp_s, harm_s, f0_s, gain_s = up(amp), up(harm), up(f0), up(gain)
    t = np.arange(n_samples, dtype=np.float64)[None, :, None]
    k = np.arange(1, n_harmonics + 1, dtype=np.float64)[None, None, :]
    phase = 2.0 * np.pi * f0_s * k * t / sample_rate
    audio = amp_s[:, :, 0] * np.sum(harm_s * np.sin(phase), axis=-1)
    return audio * gain_s[:, :, 0]


# ----------------------------------------------------------------------------
if __name__ == "__main__":
    B, N_FRAMES, K, HOP, SR = 2, 16, 8, 128, 16000.0
    N_SAMPLES = N_FRAMES * HOP          # 2048 samples, hop=128 (lane-dense blocks)

    harmonic = HarmonicGen('harmonic', n_harmonics=K, sample_rate=SR,
                           frames_per_block=8)
    dag = [
        (harmonic, {'amplitudes': 'AMP', 'harmonic_distribution': 'HARM',
                    'gain': 'GAIN', 'f0_hz': 'f0_hz'}),
    ]
    fixed_params = {'f0_hz': jnp.array([220.0], dtype=jnp.float32)}
    synth = Synthesizer(dag, name='synth', fixed_params=fixed_params)

    # AMP(1) + HARM(K) + GAIN(1) are the externally supplied (network) params.
    assert synth.ext_param_size == K + 2

    key = jax.random.PRNGKey(0)
    # Decoder/network output: [batch, n_frames, ext_param_size]
    input_tensor = jax.random.uniform(key, (B, N_FRAMES, synth.ext_param_size),
                                      dtype=jnp.float32)

    dag_input = synth.fill_params(input_tensor)
    audio, outputs = synth(dict(dag_input), n_samples=N_SAMPLES)
    audio = jax.block_until_ready(audio)
    assert audio.shape == (B, N_SAMPLES)

    ref = _reference(dag_input, N_SAMPLES, SR, K)
    np.testing.assert_allclose(np.asarray(audio), ref, rtol=1e-3, atol=1e-3)

    # TODO(synk): dict/DAG routing (fill_params, processor dispatch) is Python-side
    # plumbing with no Pallas equivalent; only the numerical generator runs as a kernel.
    print("KERNEL_OK")
</pallas_src>

<mosaic_0001>
module attributes {stable_mosaic.version = 11 : i64} {
  func.func @_harmonic_kernel(%arg0: i32, %arg1: i32, %arg2: memref<1x8x1xf32, #tpu.memory_space<vmem>>, %arg3: memref<1x8x1xf32, #tpu.memory_space<vmem>>, %arg4: memref<1x8x8xf32, #tpu.memory_space<vmem>>, %arg5: memref<1x8x128xf32, #tpu.memory_space<vmem>>) attributes {dimension_semantics = [#tpu.dimension_semantics<parallel>, #tpu.dimension_semantics<parallel>], iteration_bounds = array<i64: 2, 2>, scalar_prefetch = 0 : i64, scratch_operands = 0 : i64, tpu.core_type = #tpu.core_type<tc>, window_params = [{transform_indices = @transform_0, window_bounds = array<i64: 1, 8, 1>}, {transform_indices = @transform_1, window_bounds = array<i64: 1, 8, 1>}, {transform_indices = @transform_2, window_bounds = array<i64: 1, 8, 8>}, {transform_indices = @transform_3, window_bounds = array<i64: 1, 8, 128>}]} {
    %c0 = arith.constant 0 : index
    %c0_0 = arith.constant 0 : index
    %c0_1 = arith.constant 0 : index
    %0 = vector.load %arg2[%c0, %c0_0, %c0_1] : memref<1x8x1xf32, #tpu.memory_space<vmem>>, vector<1x8x1xf32>
    %c0_2 = arith.constant 0 : index
    %c0_3 = arith.constant 0 : index
    %c0_4 = arith.constant 0 : index
    %1 = vector.load %arg3[%c0_2, %c0_3, %c0_4] : memref<1x8x1xf32, #tpu.memory_space<vmem>>, vector<1x8x1xf32>
    %c0_5 = arith.constant 0 : index
    %c0_6 = arith.constant 0 : index
    %c0_7 = arith.constant 0 : index
    %2 = vector.load %arg4[%c0_5, %c0_6, %c0_7] : memref<1x8x8xf32, #tpu.memory_space<vmem>>, vector<1x8x8xf32>
    %c8_i32 = arith.constant 8 : i32
    %3 = arith.muli %arg1, %c8_i32 : i32
    %4 = arith.sitofp %3 : i32 to f32
    %5 = tpu.iota {dimensions = array<i32: 1>} : vector<1x8x128xi32>
    %6 = arith.sitofp %5 : vector<1x8x128xi32> to vector<1x8x128xf32>
    %7 = tpu.iota {dimensions = array<i32: 2>} : vector<1x8x128xi32>
    %8 = arith.sitofp %7 : vector<1x8x128xi32> to vector<1x8x128xf32>
    %9 = vector.broadcast %4 : f32 to vector<1x8x128xf32>
    %10 = arith.addf %9, %6 : vector<1x8x128xf32>
    %cst = arith.constant 1.280000e+02 : f32
    %11 = vector.broadcast %cst : f32 to vector<1x8x128xf32>
    %12 = arith.mulf %10, %11 : vector<1x8x128xf32>
    %13 = arith.addf %12, %8 : vector<1x8x128xf32>
    %cst_8 = arith.constant 6.250000e-05 : f32
    %14 = vector.broadcast %cst_8 : f32 to vector<1x8x128xf32>
    %15 = arith.mulf %13, %14 : vector<1x8x128xf32>
    %16 = vector.broadcast %1 : vector<1x8x1xf32> to vector<1x8x128xf32>
    %17 = arith.mulf %16, %15 : vector<1x8x128xf32>
    %18 = math.floor %17 : vector<1x8x128xf32>
    %19 = arith.subf %17, %18 : vector<1x8x128xf32>
    %cst_9 = arith.constant 6.28318548 : f32
    %20 = vector.broadcast %cst_9 : f32 to vector<1x8x128xf32>
    %21 = arith.mulf %20, %19 : vector<1x8x128xf32>
    %22 = math.sin %21 : vector<1x8x128xf32>
    %23 = math.cos %21 : vector<1x8x128xf32>
    %cst_10 = arith.constant 2.000000e+00 : f32
    %24 = vector.broadcast %cst_10 : f32 to vector<1x8x128xf32>
    %25 = arith.mulf %24, %23 : vector<1x8x128xf32>
    %26 = vector.extract_strided_slice %2 {offsets = [0, 0, 0], sizes = [1, 8, 1], strides = [1, 1, 1]} : vector<1x8x8xf32> to vector<1x8x1xf32>
    %27 = vector.broadcast %26 : vector<1x8x1xf32> to vector<1x8x128xf32>
    %28 = arith.mulf %27, %22 : vector<1x8x128xf32>
    %cst_11 = arith.constant 0.000000e+00 : f32
    %29 = vector.broadcast %cst_11 : f32 to vector<1x8x128xf32>
    %30 = arith.mulf %25, %22 : vector<1x8x128xf32>
    %31 = arith.subf %30, %29 : vector<1x8x128xf32>
    %32 = vector.extract_strided_slice %2 {offsets = [0, 0, 1], sizes = [1, 8, 1], strides = [1, 1, 1]} : vector<1x8x8xf32> to vector<1x8x1xf32>
    %33 = vector.broadcast %32 : vector<1x8x1xf32> to vector<1x8x128xf32>
    %34 = arith.mulf %33, %31 : vector<1x8x128xf32>
    %35 = arith.addf %28, %34 : vector<1x8x128xf32>
    %36 = arith.mulf %25, %31 : vector<1x8x128xf32>
    %37 = arith.subf %36, %22 : vector<1x8x128xf32>
    %38 = vector.extract_strided_slice %2 {offsets = [0, 0, 2], sizes = [1, 8, 1], strides = [1, 1, 1]} : vector<1x8x8xf32> to vector<1x8x1xf32>
    %39 = vector.broadcast %38 : vector<1x8x1xf32> to vector<1x8x128xf32>
    %40 = arith.mulf %39, %37 : vector<1x8x128xf32>
    %41 = arith.addf %35, %40 : vector<1x8x128xf32>
    %42 = arith.mulf %25, %37 : vector<1x8x128xf32>
    %43 = arith.subf %42, %31 : vector<1x8x128xf32>
    %44 = vector.extract_strided_slice %2 {offsets = [0, 0, 3], sizes = [1, 8, 1], strides = [1, 1, 1]} : vector<1x8x8xf32> to vector<1x8x1xf32>
    %45 = vector.broadcast %44 : vector<1x8x1xf32> to vector<1x8x128xf32>
    %46 = arith.mulf %45, %43 : vector<1x8x128xf32>
    %47 = arith.addf %41, %46 : vector<1x8x128xf32>
    %48 = arith.mulf %25, %43 : vector<1x8x128xf32>
    %49 = arith.subf %48, %37 : vector<1x8x128xf32>
    %50 = vector.extract_strided_slice %2 {offsets = [0, 0, 4], sizes = [1, 8, 1], strides = [1, 1, 1]} : vector<1x8x8xf32> to vector<1x8x1xf32>
    %51 = vector.broadcast %50 : vector<1x8x1xf32> to vector<1x8x128xf32>
    %52 = arith.mulf %51, %49 : vector<1x8x128xf32>
    %53 = arith.addf %47, %52 : vector<1x8x128xf32>
    %54 = arith.mulf %25, %49 : vector<1x8x128xf32>
    %55 = arith.subf %54, %43 : vector<1x8x128xf32>
    %56 = vector.extract_strided_slice %2 {offsets = [0, 0, 5], sizes = [1, 8, 1], strides = [1, 1, 1]} : vector<1x8x8xf32> to vector<1x8x1xf32>
    %57 = vector.broadcast %56 : vector<1x8x1xf32> to vector<1x8x128xf32>
    %58 = arith.mulf %57, %55 : vector<1x8x128xf32>
    %59 = arith.addf %53, %58 : vector<1x8x128xf32>
    %60 = arith.mulf %25, %55 : vector<1x8x128xf32>
    %61 = arith.subf %60, %49 : vector<1x8x128xf32>
    %62 = vector.extract_strided_slice %2 {offsets = [0, 0, 6], sizes = [1, 8, 1], strides = [1, 1, 1]} : vector<1x8x8xf32> to vector<1x8x1xf32>
    %63 = vector.broadcast %62 : vector<1x8x1xf32> to vector<1x8x128xf32>
    %64 = arith.mulf %63, %61 : vector<1x8x128xf32>
    %65 = arith.addf %59, %64 : vector<1x8x128xf32>
    %66 = arith.mulf %25, %61 : vector<1x8x128xf32>
    %67 = arith.subf %66, %55 : vector<1x8x128xf32>
    %68 = vector.extract_strided_slice %2 {offsets = [0, 0, 7], sizes = [1, 8, 1], strides = [1, 1, 1]} : vector<1x8x8xf32> to vector<1x8x1xf32>
    %69 = vector.broadcast %68 : vector<1x8x1xf32> to vector<1x8x128xf32>
    %70 = arith.mulf %69, %67 : vector<1x8x128xf32>
    %71 = arith.addf %65, %70 : vector<1x8x128xf32>
    %72 = vector.broadcast %0 : vector<1x8x1xf32> to vector<1x8x128xf32>
    %73 = arith.mulf %72, %71 : vector<1x8x128xf32>
    %c0_12 = arith.constant 0 : index
    %c0_13 = arith.constant 0 : index
    %c0_14 = arith.constant 0 : index
    %74 = vector.load %arg5[%c0_12, %c0_13, %c0_14] : memref<1x8x128xf32, #tpu.memory_space<vmem>>, vector<1x8x128xf32>
    tpu.vector_store %arg5[%c0_12, %c0_13, %c0_14], %73 {strides = array<i32>} : memref<1x8x128xf32, #tpu.memory_space<vmem>>, vector<1x8x128xf32>,
    return
  }
  func.func @transform_0(%arg0: i32, %arg1: i32) -> (i32, i32, i32) {
    %c0_i32 = arith.constant 0 : i32
    %c0_i32_0 = arith.constant 0 : i32
    return %arg0, %arg1, %c0_i32 : i32, i32, i32
  }
  func.func @transform_1(%arg0: i32, %arg1: i32) -> (i32, i32, i32) {
    %c0_i32 = arith.constant 0 : i32
    %c0_i32_0 = arith.constant 0 : i32
    return %arg0, %arg1, %c0_i32 : i32, i32, i32
  }
  func.func @transform_2(%arg0: i32, %arg1: i32) -> (i32, i32, i32) {
    %c0_i32 = arith.constant 0 : i32
    %c0_i32_0 = arith.constant 0 : i32
    return %arg0, %arg1, %c0_i32 : i32, i32, i32
  }
  func.func @transform_3(%arg0: i32, %arg1: i32) -> (i32, i32, i32) {
    %c0_i32 = arith.constant 0 : i32
    %c0_i32_0 = arith.constant 0 : i32
    return %arg0, %arg1, %c0_i32 : i32, i32, i32
  }
}

</mosaic_0001>

<llo_original>
// kernel: tpu_custom_call.1
$region0: #{tpu_custom_call.1}
  #allocation0 [shape = 'u32[]', space=smem, size = 0x4, offset = 0x4, fixed_abs, tag = 'smem constant byte address 0x4 - core index']
  #allocation1 [shape = 'u32[144,128]{1,0:T(1,128)}', space=vmem, size = 0x12000, scoped, tag = 'internal scratch']
  %s0 = inlined_call_operand.vmem [shape: f32[2,16,1], index: 0, kind: input, shape index: {}]
  %s1 = inlined_call_operand.vmem [shape: f32[2,16,1], index: 1, kind: input, shape index: {}]
  %s2 = inlined_call_operand.vmem [shape: f32[2,16,8], index: 2, kind: input, shape index: {}]
  %s3 = inlined_call_operand.hbm [shape: f32[2,16,128], index: 3, kind: output, shape index: {}]
  %s4 = sld [smem:[#allocation0]]
  $region45: #{tpu_custom_call.1} parent=0
    _
  %s6 = ssub.s32 1, %s4
  %s7 = scalar_select 0, %s6, %s4
  $region1: #{tpu_custom_call.1} parent=0
    #allocation2 [shape = 'u8[8192]{0}', space=vmem, size = 0x2000, scoped, tag = 'output window, operand 0']
    #allocation3 [shape = 's32[2]{0}', space=sflag, size = 0x8, scoped, tag = 'scoped memory for tpu_custom_call.1']
    %8 = vsyncpa [#allocation3], 0
    %s9 = scalar_lea.sflag [#allocation3], 1
    %10 = vsyncpa %s9, 0
    loop: start=0, step=1, limit=6
    $region2: #{tpu_custom_call.1} parent=1 // loop_pre_header
      _
    $region3: #{tpu_custom_call.1} parent=1 // loop_header
      %s12 = sphi 0, %s16
      %p13 = scmp.ge.s32.totalorder %s12, 6
      %s19 = sphi 0, %s31
      %s20 = sphi 0, %s27
      %s21 = sphi 0, %s19
      %s22 = sphi 0, %s20
      %s23 = sphi 0, %s21
      %s24 = sphi 0, %s22
      %s36 = sphi 0, %s38
      %s39 = sphi 0, %s36
      %s40 = sphi 0, %s39
      %s56 = sphi 0, %s40
      %s64 = sphi 0, %s66
      %s67 = sphi 0, %s64
      %s68 = sphi 0, %s67
      %s84 = sphi 0, %s68
      %s92 = sphi 0, %s94
      %s95 = sphi 0, %s92
      %s96 = sphi 0, %s95
      %s112 = sphi 0, %s96
      %s120 = sphi 0, %s122
      %s123 = sphi 0, %s120
      %s124 = sphi 0, %s123
      %s140 = sphi 0, %s124
    $region4: #{tpu_custom_call.1} parent=1 // loop_header_branch
      %15 = sbr.rel (%p13) target = $region8
    $region5: #{tpu_custom_call.1} parent=1 // loop_body
      %s17 = ssub.s32 %s12, 1
      %s18 = ssub.s32 %s12, 2
      %s25 = sadd.s32 1, %s20
      %p26 = scmp.ge.s32.totalorder %s25, 2
      %s27 = scalar_select %p26, 0, %s25
      %s28 = sadd.s32 1, %s19
      %s29 = scalar_select %p26, %s28, %s19
      %p30 = scmp.ge.s32.totalorder %s29, 2
      %s31 = scalar_select %p30, 0, %s29
      %s32 = ssub.s32 %s19, %s31
      %s33 = ssub.s32 %s20, %s27
      %s34 = sor.u32 %s32, %s33
      %p35 = scmp.eq.s32.totalorder %s34, 0
      %s37 = sadd.s32 %s36, 1
      %s38 = scalar_select %p35, %s36, %s37
      %p41 = pneg %p35
      %p42 = scmp.eq.s32.totalorder %s12, 3
      %p43 = por %p41, %p42
      %p44 = scmp.ne.s32.totalorder %s36, %s39
      %p45 = scmp.eq.s32.totalorder %s12, 0
      %p46 = por %p44, %p45
      %p47 = scmp.ne.s32.totalorder %s36, %s39
      %p48 = scmp.eq.s32.totalorder %s17, 3
      %p49 = por %p47, %p48
      %p50 = scmp.ne.s32.totalorder %s39, %s40
      %p51 = scmp.eq.s32.totalorder %s17, 0
      %p52 = por %p50, %p51
      %p53 = scmp.ne.s32.totalorder %s39, %s40
      %p54 = scmp.eq.s32.totalorder %s18, 3
      %p55 = por %p53, %p54
      %p57 = scmp.ne.s32.totalorder %s40, %s56
      %p58 = scmp.eq.s32.totalorder %s18, 0
      %p59 = por %p57, %p58
      %s60 = ssub.s32 %s19, %s31
      %s61 = ssub.s32 %s20, %s27
      %s62 = sor.u32 %s60, %s61
      %p63 = scmp.eq.s32.totalorder %s62, 0
      %s65 = sadd.s32 %s64, 1
      %s66 = scalar_select %p63, %s64, %s65
      %p69 = pneg %p63
      %p70 = scmp.eq.s32.totalorder %s12, 3
      %p71 = por %p69, %p70
      %p72 = scmp.ne.s32.totalorder %s64, %s67
      %p73 = scmp.eq.s32.totalorder %s12, 0
      %p74 = por %p72, %p73
      %p75 = scmp.ne.s32.totalorder %s64, %s67
      %p76 = scmp.eq.s32.totalorder %s17, 3
      %p77 = por %p75, %p76
      %p78 = scmp.ne.s32.totalorder %s67, %s68
      %p79 = scmp.eq.s32.totalorder %s17, 0
      %p80 = por %p78, %p79
      %p81 = scmp.ne.s32.totalorder %s67, %s68
      %p82 = scmp.eq.s32.totalorder %s18, 3
      %p83 = por %p81, %p82
      %p85 = scmp.ne.s32.totalorder %s68, %s84
      %p86 = scmp.eq.s32.totalorder %s18, 0
      %p87 = por %p85, %p86
      %s88 = ssub.s32 %s19, %s31
      %s89 = ssub.s32 %s20, %s27
      %s90 = sor.u32 %s88, %s89
      %p91 = scmp.eq.s32.totalorder %s90, 0
      %s93 = sadd.s32 %s92, 1
      %s94 = scalar_select %p91, %s92, %s93
      %p97 = pneg %p91
      %p98 = scmp.eq.s32.totalorder %s12, 3
      %p99 = por %p97, %p98
      %p100 = scmp.ne.s32.totalorder %s92, %s95
      %p101 = scmp.eq.s32.totalorder %s12, 0
      %p102 = por %p100, %p101
      %p103 = scmp.ne.s32.totalorder %s92, %s95
      %p104 = scmp.eq.s32.totalorder %s17, 3
      %p105 = por %p103, %p104
      %p106 = scmp.ne.s32.totalorder %s95, %s96
      %p107 = scmp.eq.s32.totalorder %s17, 0
      %p108 = por %p106, %p107
      %p109 = scmp.ne.s32.totalorder %s95, %s96
      %p110 = scmp.eq.s32.totalorder %s18, 3
      %p111 = por %p109, %p110
      %p113 = scmp.ne.s32.totalorder %s96, %s112
      %p114 = scmp.eq.s32.totalorder %s18, 0
      %p115 = por %p113, %p114
      %s116 = ssub.s32 %s19, %s31
      %s117 = ssub.s32 %s20, %s27
      %s118 = sor.u32 %s116, %s117
      %p119 = scmp.eq.s32.totalorder %s118, 0
      %s121 = sadd.s32 %s120, 1
      %s122 = scalar_select %p119, %s120, %s121
      %p125 = pneg %p119
      %p126 = scmp.eq.s32.totalorder %s12, 3
      %p127 = por %p125, %p126
      %p128 = scmp.ne.s32.totalorder %s120, %s123
      %p129 = scmp.eq.s32.totalorder %s12, 0
      %p130 = por %p128, %p129
      %p131 = scmp.ne.s32.totalorder %s120, %s123
      %p132 = scmp.eq.s32.totalorder %s17, 3
      %p133 = por %p131, %p132
      %p134 = scmp.ne.s32.totalorder %s123, %s124
      %p135 = scmp.eq.s32.totalorder %s17, 0
      %p136 = por %p134, %p135
      %p137 = scmp.ne.s32.totalorder %s123, %s124
      %p138 = scmp.eq.s32.totalorder %s18, 3
      %p139 = por %p137, %p138
      %p141 = scmp.ne.s32.totalorder %s124, %s140
      %p142 = scmp.eq.s32.totalorder %s18, 0
      %p143 = por %p141, %p142
      %p144 = scmp.le.s32.totalorder 1, %s12
      %p145 = scmp.lt.s32.totalorder %s12, 5
      %p146 = pnand %p144, %p145
      %p147 = pneg %p146
      // Predicated region
      $region9: #{tpu_custom_call.1} parent=5 // pred_check
        _
      $region10: #{tpu_custom_call.1} parent=5 // pred_check_branch
        %149 = sbr.rel (%p146) target = $region12
      $region11: #{tpu_custom_call.1} parent=5 // pred_region
        %s150 = ssub.s32 %s12, 1
      $region12: #{tpu_custom_call.1} parent=5 // pred_fallthru
        _
      %p151 = scmp.lt.s32.totalorder %s12, 4
      // Predicated region
      $region13: #{tpu_custom_call.1} parent=5 // pred_check
        %p152 = pneg %p151
      $region14: #{tpu_custom_call.1} parent=5 // pred_check_branch
        %154 = sbr.rel (%p152) target = $region16
      $region15: #{tpu_custom_call.1} parent=5 // pred_region
        // Predicated region
        $region17: #{tpu_custom_call.1} parent=15 // pred_check
          %p155 = pneg %p46
        $region18: #{tpu_custom_call.1} parent=15 // pred_check_branch
          %157 = sbr.rel (%p155) target = $region20
        $region19: #{tpu_custom_call.1} parent=15 // pred_region
          %p158 = scmp.lt.s32.totalorder %s19, 1
          %s159 = scalar_select %p158, %s19, 1
          %p160 = scmp.lt.s32.totalorder %s20, 1
          %s161 = scalar_select %p160, %s20, 1
          %s162 = smul.addr %s159, 2
          %s163 = sadd.s32 %s161, %s162
          %s164 = smul.addr %s163, 8
          %s165 = scalar_lea.vmem %s0, %s164
        $region20: #{tpu_custom_call.1} parent=15 // pred_fallthru
          _
        // Predicated region
        $region21: #{tpu_custom_call.1} parent=15 // pred_check
          %p166 = pneg %p74
        $region22: #{tpu_custom_call.1} parent=15 // pred_check_branch
          %168 = sbr.rel (%p166) target = $region24
        $region23: #{tpu_custom_call.1} parent=15 // pred_region
          %p169 = scmp.lt.s32.totalorder %s19, 1
          %s170 = scalar_select %p169, %s19, 1
          %p171 = scmp.lt.s32.totalorder %s20, 1
          %s172 = scalar_select %p171, %s20, 1
          %s173 = smul.addr %s170, 2
          %s174 = sadd.s32 %s172, %s173
          %s175 = smul.addr %s174, 8
          %s176 = scalar_lea.vmem %s1, %s175
        $region24: #{tpu_custom_call.1} parent=15 // pred_fallthru
          _
        // Predicated region
        $region25: #{tpu_custom_call.1} parent=15 // pred_check
          %p177 = pneg %p102
        $region26: #{tpu_custom_call.1} parent=15 // pred_check_branch
          %179 = sbr.rel (%p177) target = $region28
        $region27: #{tpu_custom_call.1} parent=15 // pred_region
          %p180 = scmp.lt.s32.totalorder %s19, 1
          %s181 = scalar_select %p180, %s19, 1
          %p182 = scmp.lt.s32.totalorder %s20, 1
          %s183 = scalar_select %p182, %s20, 1
          %s184 = smul.addr %s181, 2
          %s185 = sadd.s32 %s183, %s184
          %s186 = smul.addr %s185, 8
          %s187 = scalar_lea.vmem %s2, %s186
        $region28: #{tpu_custom_call.1} parent=15 // pred_fallthru
          _
      $region16: #{tpu_custom_call.1} parent=5 // pred_fallthru
        _
      %p188 = scmp.le.s32.totalorder 1, %s12
      %p189 = scmp.lt.s32.totalorder %s12, 5
      %p190 = pnand %p188, %p189
      %p191 = pneg %p190
      // Predicated region
      $region29: #{tpu_custom_call.1} parent=5 // pred_check
        _
      $region30: #{tpu_custom_call.1} parent=5 // pred_check_branch
        %193 = sbr.rel (%p190) target = $region32
      $region31: #{tpu_custom_call.1} parent=5 // pred_region
        %s194 = ssub.s32 %s12, 1
        %p195 = scmp.lt.s32.totalorder %s21, 1
        %s196 = scalar_select %p195, %s21, 1
        %p197 = scmp.lt.s32.totalorder %s22, 1
        %s198 = scalar_select %p197, %s22, 1
        %s199 = smul.addr %s196, 2
        %s200 = sadd.s32 %s198, %s199
        %s201 = smul.addr %s200, 8
        %s202 = scalar_lea.vmem %s0, %s201
        %p203 = pneg %p52
        %p204 = pneg %p49
        %p205 = scmp.lt.s32.totalorder %s21, 1
        %s206 = scalar_select %p205, %s21, 1
        %p207 = scmp.lt.s32.totalorder %s22, 1
        %s208 = scalar_select %p207, %s22, 1
        %s209 = smul.addr %s206, 2
        %s210 = sadd.s32 %s208, %s209
        %s211 = smul.addr %s210, 8
        %s212 = scalar_lea.vmem %s1, %s211
        %p213 = pneg %p80
        %p214 = pneg %p77
        %p215 = scmp.lt.s32.totalorder %s21, 1
        %s216 = scalar_select %p215, %s21, 1
        %p217 = scmp.lt.s32.totalorder %s22, 1
        %s218 = scalar_select %p217, %s22, 1
        %s219 = smul.addr %s216, 2
        %s220 = sadd.s32 %s218, %s219
        %s221 = smul.addr %s220, 8
        %s222 = scalar_lea.vmem %s2, %s221
        %p223 = pneg %p108
        %p224 = pneg %p105
        %p225 = pneg %p136
        %p226 = pneg %p133
        %s227 = sand.u32 %s123, 1
        %s228 = scalar_lea.sflag [#allocation3], %s227
        %s229 = sand.u32 %s123, 1
        %s230 = smul.addr %s229, 8
        %s231 = scalar_lea.vmem [#allocation2], %s230
        %p232 = scmp.lt.s32.totalorder %s21, 1
        %s233 = scalar_select %p232, %s21, 1
        %p234 = scmp.lt.s32.totalorder %s22, 1
        %s235 = scalar_select %p234, %s22, 1
        %s236 = smul.addr %s233, 2
        %s237 = sadd.s32 %s235, %s236
        %s238 = smul.addr %s237, 8
        %s239 = scalar_lea.vmem %s0, %s238
        %p240 = scmp.lt.s32.totalorder %s21, 1
        %s241 = scalar_select %p240, %s21, 1
        %p242 = scmp.lt.s32.totalorder %s22, 1
        %s243 = scalar_select %p242, %s22, 1
        %s244 = smul.addr %s241, 2
        %s245 = sadd.s32 %s243, %s244
        %s246 = smul.addr %s245, 8
        %s247 = scalar_lea.vmem %s1, %s246
        %p248 = scmp.lt.s32.totalorder %s21, 1
        %s249 = scalar_select %p248, %s21, 1
        %p250 = scmp.lt.s32.totalorder %s22, 1
        %s251 = scalar_select %p250, %s22, 1
        %s252 = smul.addr %s249, 2
        %s253 = sadd.s32 %s251, %s252
        %s254 = smul.addr %s253, 8
        %s255 = scalar_lea.vmem %s2, %s254
        %v256 = vld [vmem:[%s239] sm:$0xff]
        %v257 = vld [vmem:[%s247] sm:$0xff]
        %v258 = vld [vmem:[%s255] sm:$0xff]
        %s259 = smul.u32 %s22, 8
        %s260 = scvt.s32.f32 %s259
        %v261 = vlaneseq
        %v262 = vshrl.u32 %v261, 7
        %v263 = vcvt.s32.f32 %v262
        %v264 = vlaneseq
        %v265 = vand.u32 %v264, 127
        %v266 = vcvt.s32.f32 %v265
        %v267 = vstv %s260
        %v268 = vadd.f32 %v267, %v263
        %v269 = vmul.f32 %v268, 128.0
        %v270 = vadd.f32 %v269, %v266
        %v271 = vmul.f32 %v270, 6.25e-05
        %273 = vset.pattern.permute.xlu0 0
        %274 = vperm.xlu0 %273, %v257
        %v275 = vpop.permute.xlu0 %274
        %v277 = vmul.f32 %v275, %v271
        %v278 = vfloor.f32 %v277
        %v279 = vsub.f32 %v277, %v278
        %v280 = vmul.f32 %v279, 6.2831855
        %v281 = vand.u32 2147483647, %v280
        %vm282 = vcmp.le.f32.partialorder %v281, 0.7853982
        %vm283 = vcmp.lt.s32.totalorder %v280, 0
        %v284 = vand.u32 %v280, 2139095040
        %v285 = vshrl.u32 %v284, 23
        %v286 = vsub.s32 %v285, 127
        %v287 = vand.u32 2147483647, %v280
        %v288 = vand.u32 %v287, 8388607
        %v289 = vor.u32 %v288, 8388608
        %v290 = vsub.s32 0, %v289
        %v291 = vadd.s32 %v286, 1
        %vm292 = vcmp.gt.s32.totalorder %v291, 0
        %v293 = vsel %vm292, %v291, 0
        %v294 = vshrl.u32 %v293, 5
        %v295 = vand.u32 %v293, 31
        %v296 = vsub.s32 32, %v295
        %v297 = vshrl.u32 683565275, %v296
        %v298 = vshll.u32 683565275, %v295
        %v299 = vshrl.u32 2475754826, %v296
        %v300 = vor.u32 %v298, %v299
        %v301 = vshll.u32 2475754826, %v295
        %v302 = vshrl.u32 2131351028, %v296
        %v303 = vor.u32 %v301, %v302
        %v304 = vshll.u32 2131351028, %v295
        %v305 = vshrl.u32 2102212464, %v296
        %v306 = vor.u32 %v304, %v305
        %v307 = vshll.u32 2102212464, %v295
        %v308 = vshrl.u32 920167782, %v296
        %v309 = vor.u32 %v307, %v308
        %v310 = vshll.u32 920167782, %v295
        %v311 = vshrl.u32 1326507024, %v296
        %v312 = vor.u32 %v310, %v311
        %vm313 = vcmp.lt.s32.totalorder %v294, 1
        %vm314 = vcmp.lt.s32.totalorder %v294, 2
        %vm315 = vcmp.lt.s32.totalorder %v294, 3
        %vm316 = vcmp.lt.s32.totalorder %v294, 4
        %v317 = vsel %vm313, %v297, %v300
        %v318 = vsel %vm316, %v306, 2102212464
        %v319 = vsel %vm315, %v303, %v318
        %v320 = vsel %vm314, %v317, %v319
        %v321 = vsel %vm313, %v300, %v303
        %v322 = vsel %vm316, %v309, 920167782
        %v323 = vsel %vm315, %v306, %v322
        %v324 = vsel %vm314, %v321, %v323
        %v325 = vsel %vm313, %v303, %v306
        %v326 = vsel %vm316, %v312, 1326507024
        %v327 = vsel %vm315, %v309, %v326
        %v328 = vsel %vm314, %v325, %v327
        %v329 = vshll.u32 %v289, 8
        %v330 = vmul.u32.u64.compose %v329, %v328
        %v331 = vextract.low.u32 %v330
        %v332 = vextract.high.u32 %v330
        %v333 = vmul.u32.u64.compose %v329, %v324
        %v334 = vextract.low.u32 %v333
        %v335 = vextract.high.u32 %v333
        %v336 = vmul.u32 %v329, %v320
        %v337 = vadd.s32 %v332, %v334
        %vm338 = vc.u32 %v332, %v334
        %v339 = vadd.s32 %v335, 1
        %v340 = vsel %vm338, %v339, %v335
        %v341 = vadd.s32 %v336, %v340
        %v342 = vadd.s32 %v341, 536870912
        %v343 = vshrl.u32 %v342, 30
        %v344 = vshll.u32 %v343, 30
        %v345 = vsub.s32 %v341, %v344
        %vm346 = vcmp.lt.s32.totalorder %v345, 0
        %v347 = vsub.s32 0, %v345
        %v348 = vsel %vm346, %v347, %v345
        %v349 = vclz %v348
        %v350 = vsub.s32 %v349, 2
        %vm351 = vcmp.gt.s32.totalorder 0, %v350
        %v352 = vsel %vm351, 0, %v350
        %v353 = vsub.s32 32, %v352
        %v354 = vshll.u32 %v345, %v352
        %v355 = vshrl.u32 %v337, %v353
        %v356 = vor.u32 %v354, %v355
        %v357 = vsub.s32 4294967266, %v352
        %v358 = vadd.s32 %v357, 127
        %v359 = vshll.u32 %v358, 23
        %v360 = vor.u32 4788187, %v359
        %v361 = vand.u32 2147483647, %v360
        %v363 = vcvt.s32.f32 %v356
        %v364 = vmul.f32 %v363, %v361
        %v365 = vxor.u32 %v364, 2147483648
        %v366 = vsel %vm283, %v365, %v364
        %v367 = vsub.s32 4, %v343
        %v368 = vsel %vm283, %v367, %v343
        %v369 = vsel %vm282, %v280, %v366
        %v370 = vsel %vm282, 0, %v368
        %v371 = vcosq.f32.pop %v369
        %v372 = vsinq.f32.pop %v369
        %vm373 = vweird.f32 %v280
        %v374 = vadd.s32 %v370, 3
        %v375 = vand.u32 %v374, 3
        %vm376 = vcmp.lt.s32.totalorder %v375, 2
        %vm377 = vcmp.eq.s32.totalorder %v375, 0
        %v378 = vxor.u32 %v372, 2147483648
        %v379 = vsel %vm377, %v371, %v378
        %vm380 = vcmp.eq.s32.totalorder %v375, 2
        %v381 = vxor.u32 %v371, 2147483648
        %v382 = vsel %vm380, %v381, %v372
        %v383 = vsel %vm376, %v379, %v382
        %v384 = vsel %vm373, nan, %v383
        %v385 = vand.u32 2147483647, %v280
        %vm386 = vcmp.le.f32.partialorder %v385, 0.7853982
        %vm387 = vcmp.lt.s32.totalorder %v280, 0
        %v388 = vand.u32 %v280, 2139095040
        %v389 = vshrl.u32 %v388, 23
        %v390 = vsub.s32 %v389, 127
        %v391 = vand.u32 2147483647, %v280
        %v392 = vand.u32 %v391, 8388607
        %v393 = vor.u32 %v392, 8388608
        %v394 = vsub.s32 0, %v393
        %v395 = vadd.s32 %v390, 1
        %vm396 = vcmp.gt.s32.totalorder %v395, 0
        %v397 = vsel %vm396, %v395, 0
        %v398 = vshrl.u32 %v397, 5
        %v399 = vand.u32 %v397, 31
        %v400 = vsub.s32 32, %v399
        %v401 = vshrl.u32 683565275, %v400
        %v402 = vshll.u32 683565275, %v399
        %v403 = vshrl.u32 2475754826, %v400
        %v404 = vor.u32 %v402, %v403
        %v405 = vshll.u32 2475754826, %v399
        %v406 = vshrl.u32 2131351028, %v400
        %v407 = vor.u32 %v405, %v406
        %v408 = vshll.u32 2131351028, %v399
        %v409 = vshrl.u32 2102212464, %v400
        %v410 = vor.u32 %v408, %v409
        %v411 = vshll.u32 2102212464, %v399
        %v412 = vshrl.u32 920167782, %v400
        %v413 = vor.u32 %v411, %v412
        %v414 = vshll.u32 920167782, %v399
        %v415 = vshrl.u32 1326507024, %v400
        %v416 = vor.u32 %v414, %v415
        %vm417 = vcmp.lt.s32.totalorder %v398, 1
        %vm418 = vcmp.lt.s32.totalorder %v398, 2
        %vm419 = vcmp.lt.s32.totalorder %v398, 3
        %vm420 = vcmp.lt.s32.totalorder %v398, 4
        %v421 = vsel %vm417, %v401, %v404
        %v422 = vsel %vm420, %v410, 2102212464
        %v423 = vsel %vm419, %v407, %v422
        %v424 = vsel %vm418, %v421, %v423
        %v425 = vsel %vm417, %v404, %v407
        %v426 = vsel %vm420, %v413, 920167782
        %v427 = vsel %vm419, %v410, %v426
        %v428 = vsel %vm418, %v425, %v427
        %v429 = vsel %vm417, %v407, %v410
        %v430 = vsel %vm420, %v416, 1326507024
        %v431 = vsel %vm419, %v413, %v430
        %v432 = vsel %vm418, %v429, %v431
        %v433 = vshll.u32 %v393, 8
        %v434 = vmul.u32.u64.compose %v433, %v432
        %v435 = vextract.low.u32 %v434
        %v436 = vextract.high.u32 %v434
        %v437 = vmul.u32.u64.compose %v433, %v428
        %v438 = vextract.low.u32 %v437
        %v439 = vextract.high.u32 %v437
        %v440 = vmul.u32 %v433, %v424
        %v441 = vadd.s32 %v436, %v438
        %vm442 = vc.u32 %v436, %v438
        %v443 = vadd.s32 %v439, 1
        %v444 = vsel %vm442, %v443, %v439
        %v445 = vadd.s32 %v440, %v444
        %v446 = vadd.s32 %v445, 536870912
        %v447 = vshrl.u32 %v446, 30
        %v448 = vshll.u32 %v447, 30
        %v449 = vsub.s32 %v445, %v448
        %vm450 = vcmp.lt.s32.totalorder %v449, 0
        %v451 = vsub.s32 0, %v449
        %v452 = vsel %vm450, %v451, %v449
        %v453 = vclz %v452
        %v454 = vsub.s32 %v453, 2
        %vm455 = vcmp.gt.s32.totalorder 0, %v454
        %v456 = vsel %vm455, 0, %v454
        %v457 = vsub.s32 32, %v456
        %v458 = vshll.u32 %v449, %v456
        %v459 = vshrl.u32 %v441, %v457
        %v460 = vor.u32 %v458, %v459
        %v461 = vsub.s32 4294967266, %v456
        %v462 = vadd.s32 %v461, 127
        %v463 = vshll.u32 %v462, 23
        %v464 = vor.u32 4788187, %v463
        %v465 = vand.u32 2147483647, %v464
        %v467 = vcvt.s32.f32 %v460
        %v468 = vmul.f32 %v467, %v465
        %v469 = vxor.u32 %v468, 2147483648
        %v470 = vsel %vm387, %v469, %v468
        %v471 = vsub.s32 4, %v447
        %v472 = vsel %vm387, %v471, %v447
        %v473 = vsel %vm386, %v280, %v470
        %v474 = vsel %vm386, 0, %v472
        %v475 = vcosq.f32.pop %v473
        %v476 = vsinq.f32.pop %v473
        %vm477 = vweird.f32 %v280
        %v478 = vand.u32 %v474, 3
        %vm479 = vcmp.lt.s32.totalorder %v478, 2
        %vm480 = vcmp.eq.s32.totalorder %v478, 0
        %v481 = vxor.u32 %v476, 2147483648
        %v482 = vsel %vm480, %v475, %v481
        %vm483 = vcmp.eq.s32.totalorder %v478, 2
        %v484 = vxor.u32 %v475, 2147483648
        %v485 = vsel %vm483, %v484, %v476
        %v486 = vsel %vm479, %v482, %v485
        %v487 = vsel %vm477, nan, %v486
        %v488 = vmul.f32 %v487, 2.0
        %490 = vset.pattern.permute.xlu0 0
        %491 = vperm.xlu0 %490, %v258
        %v492 = vpop.permute.xlu0 %491
        %v494 = vmul.f32 %v492, %v384
        %v495 = vmul.f32 %v488, %v384
        %496 = vset.pattern.permute.xlu0 1
        %497 = vperm.xlu0 %496, %v258
        %v498 = vpop.permute.xlu0 %497
        %v500 = vmul.f32 %v498, %v495
        %v501 = vadd.f32 %v494, %v500
        %v502 = vmul.f32 %v488, %v495
        %v503 = vsub.f32 %v502, %v384
        %504 = vset.pattern.permute.xlu0 2
        %505 = vperm.xlu0 %504, %v258
        %v506 = vpop.permute.xlu0 %505
        %v508 = vmul.f32 %v506, %v503
        %v509 = vadd.f32 %v501, %v508
        %v510 = vmul.f32 %v488, %v503
        %v511 = vsub.f32 %v510, %v495
        %512 = vset.pattern.permute.xlu0 3
        %513 = vperm.xlu0 %512, %v258
        %v514 = vpop.permute.xlu0 %513
        %v516 = vmul.f32 %v514, %v511
        %v517 = vadd.f32 %v509, %v516
        %v518 = vmul.f32 %v488, %v511
        %v519 = vsub.f32 %v518, %v503
        %520 = vset.pattern.permute.xlu0 4
        %521 = vperm.xlu0 %520, %v258
        %v522 = vpop.permute.xlu0 %521
        %v524 = vmul.f32 %v522, %v519
        %v525 = vadd.f32 %v517, %v524
        %v526 = vmul.f32 %v488, %v519
        %v527 = vsub.f32 %v526, %v511
        %528 = vset.pattern.permute.xlu0 5
        %529 = vperm.xlu0 %528, %v258
        %v530 = vpop.permute.xlu0 %529
        %v532 = vmul.f32 %v530, %v527
        %v533 = vadd.f32 %v525, %v532
        %v534 = vmul.f32 %v488, %v527
        %v535 = vsub.f32 %v534, %v519
        %536 = vset.pattern.permute.xlu0 6
        %537 = vperm.xlu0 %536, %v258
        %v538 = vpop.permute.xlu0 %537
        %v540 = vmul.f32 %v538, %v535
        %v541 = vadd.f32 %v533, %v540
        %v542 = vmul.f32 %v488, %v535
        %v543 = vsub.f32 %v542, %v527
        %544 = vset.pattern.permute.xlu0 7
        %545 = vperm.xlu0 %544, %v258
        %v546 = vpop.permute.xlu0 %545
        %v548 = vmul.f32 %v546, %v543
        %v549 = vadd.f32 %v541, %v548
        %551 = vset.pattern.permute.xlu0 0
        %552 = vperm.xlu0 %551, %v256
        %v553 = vpop.permute.xlu0 %552
        %v555 = vmul.f32 %v553, %v549
        %556 = vst [vmem:[%s231] sm:$0xff] %v555
        %s557 = sand.u32 %s123, 1
        %s558 = scalar_lea.sflag [#allocation3], %s557
        %s559 = sand.u32 %s123, 1
        %s560 = smul.addr %s559, 8
        %s561 = scalar_lea.vmem [#allocation2], %s560
        // Predicated region
        $region33: #{tpu_custom_call.1} parent=31 // pred_check
          %p562 = pneg %p133
        $region34: #{tpu_custom_call.1} parent=31 // pred_check_branch
          %564 = sbr.rel (%p562) target = $region36
        $region35: #{tpu_custom_call.1} parent=31 // pred_region
          %s566 = ssub.s32 128, 128
          %567 = vsyncadd %s558, %s566
          %s568 = smul.addr %s21, 2
          %s569 = sadd.s32 %s22, %s568
          %s570 = smul.addr %s569, 128
          %s571 = scalar_lea.hbm %s3, %s570
          %s573 = sshll.u32 %s561, 4
          %s574 = int_to_ptr.vmem [resolvable:$true] %s573
          %576 = dma.vmem_to_hbm [thread:$0]  %s574, 128, %s571, %s558
        $region36: #{tpu_custom_call.1} parent=31 // pred_fallthru
          _
      $region32: #{tpu_custom_call.1} parent=5 // pred_fallthru
        _
      %p577 = scmp.le.s32.totalorder 2, %s12
      // Predicated region
      $region37: #{tpu_custom_call.1} parent=5 // pred_check
        %p578 = pneg %p577
      $region38: #{tpu_custom_call.1} parent=5 // pred_check_branch
        %580 = sbr.rel (%p578) target = $region40
      $region39: #{tpu_custom_call.1} parent=5 // pred_region
        %s581 = ssub.s32 %s12, 2
        // Predicated region
        $region41: #{tpu_custom_call.1} parent=39 // pred_check
          %p582 = pneg %p139
        $region42: #{tpu_custom_call.1} parent=39 // pred_check_branch
          %584 = sbr.rel (%p582) target = $region44
        $region43: #{tpu_custom_call.1} parent=39 // pred_region
          %s585 = sand.u32 %s124, 1
          %s586 = scalar_lea.sflag [#allocation3], %s585
          %s587 = sand.u32 %s124, 1
          %s588 = smul.addr %s587, 8
          %s589 = scalar_lea.vmem [#allocation2], %s588
          %590 = dma.done %s586, 128
        $region44: #{tpu_custom_call.1} parent=39 // pred_fallthru
          _
      $region40: #{tpu_custom_call.1} parent=5 // pred_fallthru
        _
    $region6: #{tpu_custom_call.1} parent=1 // loop_footer
      %s16 = sadd.s32 1, %s12
    $region7: #{tpu_custom_call.1} parent=1 // loop_footer_branch
      %11 = sbr.rel target = $region3
    $region8: #{tpu_custom_call.1} parent=1 // loop_exit
      _
    %591 = vsyncpa [#allocation3], 1
    %s592 = scalar_lea.sflag [#allocation3], 1
    %593 = vsyncpa %s592, 1

</llo_original>
